<compile_context>
chip_gen: v7x
topology: tpu7x:2x2x1
jax: 0.10.0
libtpu: 0.0.40
codegen_flags: <defaults>
</compile_context>

<pallas_src>
import jax
import jax.numpy as jnp
from jax.experimental import pallas as pl
from jax.experimental.pallas import tpu as pltpu


def _round_up(n, m):
    return ((n + m - 1) // m) * m


def encoder_forward(x, axial, params, eps=1e-5):
    """x: (B, Cin, H, W); axial: (B, Cout, H, W); params: conv/bn tensors."""
    (w1, b1, g1, be1, m1, v1, w2, b2, g2, be2, m2, v2) = params
    B, Cin, H, W = x.shape
    Cout = w1.shape[0]
    Hp, Wp = H + 2, W + 2              # zero-padded spatial extent
    Np = Hp * Wp                       # flat padded domain (conv arithmetic width)
    smax = 2 * Wp + 2                  # largest tap shift in the flat domain
    Nw = _round_up(Np, 128)            # lane-dense work / output width
    Nx = _round_up(Nw + smax, 128)     # extended width so shifted reads stay in-bounds
    Cp = _round_up(max(Cin, Cout), 8)  # channels padded to the 8-sublane tile
    f32 = jnp.float32

    # ---- fold eval-mode BatchNorm into conv weight/bias (hoisted, done once) ----
    def fold(w, b, g, be, m, v):
        s = g.astype(f32) / jnp.sqrt(v.astype(f32) + eps)
        return (w.astype(f32) * s[:, None, None, None],
                (b.astype(f32) - m.astype(f32)) * s + be.astype(f32))

    w1f, b1f = fold(w1, b1, g1, be1, m1, v1)
    w2f, b2f = fold(w2, b2, g2, be2, m2, v2)

    # stack the 9 per-tap channel-mix matrices along the contraction axis:
    #   Wstk[o, k*Cp + i] = w[o, i, ky, kx]   with k = ky*3 + kx
    def taps_stacked(wf, ci, co):
        t = jnp.transpose(wf, (2, 3, 0, 1)).reshape(9, co, ci)
        t = jnp.pad(t, ((0, 0), (0, Cp - co), (0, Cp - ci)))
        return jnp.transpose(t, (1, 0, 2)).reshape(Cp, 9 * Cp)

    w1t = taps_stacked(w1f, Cin, Cout)
    w2t = taps_stacked(w2f, Cout, Cout)
    b1c = jnp.pad(b1f.reshape(Cout, 1), ((0, Cp - Cout), (0, 0)))
    b2c = jnp.pad(b2f.reshape(Cout, 1), ((0, Cp - Cout), (0, 0)))

    # ---- lane-dense flat-domain layout (wrapper-side shape plumbing only) ----
    xp = jnp.pad(x.astype(f32), ((0, 0), (0, Cp - Cin), (1, 1), (1, 1)))
    xpe = jnp.pad(xp.reshape(B, Cp, Np), ((0, 0), (0, 0), (0, Nx - Np)))
    axf = jnp.pad(axial.astype(f32), ((0, 0), (0, Cp - Cout), (0, 2), (0, 2)))
    axf = jnp.pad(axf.reshape(B, Cp, Np), ((0, 0), (0, 0), (0, Nw - Np)))
    # valid conv outputs live at flat positions q = y*Wp + x with y < H, x < W
    valid = (jnp.arange(Hp) < H)[:, None] & (jnp.arange(Wp) < W)[None, :]
    mask = jnp.pad(valid.astype(f32).reshape(1, Np), ((0, 0), (0, Nw - Np)))

    offs = tuple((k // 3) * Wp + (k % 3) for k in range(9))

    def kernel(xpe_ref, ax_ref, mask_ref, w1_ref, b1_ref, w2_ref, b2_ref,
               o_ref, mid_ref):
        def conv(w_ref, b_ref, src):
            # stack the 9 shifted views along sublanes -> one MXU matmul
            rhs = jnp.concatenate([src(off) for off in offs], axis=0)   # (9*Cp, Nw)
            return jnp.dot(w_ref[...], rhs,
                           preferred_element_type=jnp.float32) + b_ref[...]

        # conv1 (+ folded BN) + ReLU, add axial feature, zero invalid positions
        h = conv(w1_ref, b1_ref, lambda off: xpe_ref[0, :, off:off + Nw])
        h = (jnp.maximum(h, 0.0) + ax_ref[0]) * mask_ref[...]
        # stage h shifted by (Wp+1) lanes so conv2 sees a zero-padded grid
        mid_ref[...] = jnp.zeros_like(mid_ref)
        mid_ref[:, Wp + 1:Wp + 1 + Nw] = h
        # conv2 (+ folded BN) + ReLU; full-width lane-dense store
        o = conv(w2_ref, b2_ref, lambda off: mid_ref[:, off:off + Nw])
        o_ref[0] = jnp.maximum(o, 0.0).astype(o_ref.dtype)

    out_flat = pl.pallas_call(
        kernel,
        out_shape=jax.ShapeDtypeStruct((B, Cp, Nw), x.dtype),
        grid_spec=pltpu.PrefetchScalarGridSpec(
            num_scalar_prefetch=0,
            grid=(B,),
            in_specs=[
                pl.BlockSpec((1, Cp, Nx), lambda b: (b, 0, 0)),   # x, flat + extended
                pl.BlockSpec((1, Cp, Nw), lambda b: (b, 0, 0)),   # axial, flat
                pl.BlockSpec((1, Nw), lambda b: (0, 0)),          # validity mask
                pl.BlockSpec((Cp, 9 * Cp), lambda b: (0, 0)),     # conv1 taps (stacked)
                pl.BlockSpec((Cp, 1), lambda b: (0, 0)),          # conv1 bias
                pl.BlockSpec((Cp, 9 * Cp), lambda b: (0, 0)),     # conv2 taps (stacked)
                pl.BlockSpec((Cp, 1), lambda b: (0, 0)),          # conv2 bias
            ],
            out_specs=pl.BlockSpec((1, Cp, Nw), lambda b: (b, 0, 0)),
            scratch_shapes=[pltpu.VMEM((Cp, Nx), jnp.float32)],
        ),
        compiler_params=pltpu.CompilerParams(
            dimension_semantics=("parallel",),
        ),
    )(xpe, axf, mask, w1t, b1c, w2t, b2c)

    # undo the plumbing: keep real channels and the valid top-left spatial corner
    out = out_flat[:, :Cout, :Np].reshape(B, Cout, Hp, Wp)[:, :, :H, :W]
    return out


def encoder_reference(x, axial, params, eps=1e-5):
    w1, b1, g1, be1, m1, v1, w2, b2, g2, be2, m2, v2 = params

    def block(h, w, b, g, be, m, v):
        y = jax.lax.conv_general_dilated(
            h, w, window_strides=(1, 1), padding=((1, 1), (1, 1)),
            dimension_numbers=("NCHW", "OIHW", "NCHW"))
        y = y + b[None, :, None, None]
        scale = g / jnp.sqrt(v + eps)
        y = (y - m[None, :, None, None]) * scale[None, :, None, None] \
            + be[None, :, None, None]
        return jnp.maximum(y, 0.0)

    h = block(x, w1, b1, g1, be1, m1, v1)
    h = h + axial
    return block(h, w2, b2, g2, be2, m2, v2)


if __name__ == "__main__":
    B, Cin, Cout, H, W = 2, 4, 4, 16, 16
    key = jax.random.PRNGKey(0)
    ks = jax.random.split(key, 16)

    x = jax.random.normal(ks[0], (B, Cin, H, W), dtype=jnp.float32)
    axial = jax.random.normal(ks[1], (B, Cout, H, W), dtype=jnp.float32)

    w1 = 0.2 * jax.random.normal(ks[2], (Cout, Cin, 3, 3), dtype=jnp.float32)
    b1 = 0.1 * jax.random.normal(ks[3], (Cout,), dtype=jnp.float32)
    g1 = 1.0 + 0.1 * jax.random.normal(ks[4], (Cout,), dtype=jnp.float32)
    be1 = 0.1 * jax.random.normal(ks[5], (Cout,), dtype=jnp.float32)
    m1 = 0.1 * jax.random.normal(ks[6], (Cout,), dtype=jnp.float32)
    v1 = 0.5 + jnp.abs(jax.random.normal(ks[7], (Cout,), dtype=jnp.float32))

    w2 = 0.2 * jax.random.normal(ks[8], (Cout, Cout, 3, 3), dtype=jnp.float32)
    b2 = 0.1 * jax.random.normal(ks[9], (Cout,), dtype=jnp.float32)
    g2 = 1.0 + 0.1 * jax.random.normal(ks[10], (Cout,), dtype=jnp.float32)
    be2 = 0.1 * jax.random.normal(ks[11], (Cout,), dtype=jnp.float32)
    m2 = 0.1 * jax.random.normal(ks[12], (Cout,), dtype=jnp.float32)
    v2 = 0.5 + jnp.abs(jax.random.normal(ks[13], (Cout,), dtype=jnp.float32))

    params = (w1, b1, g1, be1, m1, v1, w2, b2, g2, be2, m2, v2)

    out = encoder_forward(x, axial, params)
    jax.block_until_ready(out)

    ref = encoder_reference(x, axial, params)
    assert out.shape == ref.shape, (out.shape, ref.shape)
    err = float(jnp.max(jnp.abs(out - ref)))
    assert jnp.allclose(out, ref, atol=1e-4, rtol=1e-4), f"mismatch vs reference, max abs err {err}"

    print("KERNEL_OK")
</pallas_src>

<mosaic_0001>
module attributes {stable_mosaic.version = 11 : i64} {
  func.func @kernel(%arg0: i32, %arg1: memref<1x8x512xf32, #tpu.memory_space<vmem>>, %arg2: memref<1x8x384xf32, #tpu.memory_space<vmem>>, %arg3: memref<1x384xf32, #tpu.memory_space<vmem>>, %arg4: memref<8x72xf32, #tpu.memory_space<vmem>>, %arg5: memref<8x1xf32, #tpu.memory_space<vmem>>, %arg6: memref<8x72xf32, #tpu.memory_space<vmem>>, %arg7: memref<8x1xf32, #tpu.memory_space<vmem>>, %arg8: memref<1x8x384xf32, #tpu.memory_space<vmem>>, %arg9: memref<8x512xf32, #tpu.memory_space<vmem>>) attributes {dimension_semantics = [#tpu.dimension_semantics<parallel>], iteration_bounds = array<i64: 2>, scalar_prefetch = 0 : i64, scratch_operands = 1 : i64, tpu.core_type = #tpu.core_type<tc>, window_params = [{transform_indices = @transform_0, window_bounds = array<i64: 1, 8, 512>}, {transform_indices = @transform_1, window_bounds = array<i64: 1, 8, 384>}, {pipeline_mode = #tpu.pipeline_mode<synchronous>, transform_indices = @transform_2, window_bounds = array<i64: 1, 384>}, {pipeline_mode = #tpu.pipeline_mode<synchronous>, transform_indices = @transform_3, window_bounds = array<i64: 8, 72>}, {pipeline_mode = #tpu.pipeline_mode<synchronous>, transform_indices = @transform_4, window_bounds = array<i64: 8, 1>}, {pipeline_mode = #tpu.pipeline_mode<synchronous>, transform_indices = @transform_5, window_bounds = array<i64: 8, 72>}, {pipeline_mode = #tpu.pipeline_mode<synchronous>, transform_indices = @transform_6, window_bounds = array<i64: 8, 1>}, {transform_indices = @transform_7, window_bounds = array<i64: 1, 8, 384>}]} {
    %c0 = arith.constant 0 : index
    %c0_0 = arith.constant 0 : index
    %c0_1 = arith.constant 0 : index
    %0 = vector.load %arg1[%c0, %c0_0, %c0_1] : memref<1x8x512xf32, #tpu.memory_space<vmem>>, vector<1x8x384xf32>
    %1 = vector.shape_cast %0 : vector<1x8x384xf32> to vector<8x384xf32>
    %c0_2 = arith.constant 0 : index
    %c0_3 = arith.constant 0 : index
    %c1 = arith.constant 1 : index
    %2 = vector.load %arg1[%c0_2, %c0_3, %c1] : memref<1x8x512xf32, #tpu.memory_space<vmem>>, vector<1x8x384xf32>
    %3 = vector.shape_cast %2 : vector<1x8x384xf32> to vector<8x384xf32>
    %c0_4 = arith.constant 0 : index
    %c0_5 = arith.constant 0 : index
    %c2 = arith.constant 2 : index
    %4 = vector.load %arg1[%c0_4, %c0_5, %c2] : memref<1x8x512xf32, #tpu.memory_space<vmem>>, vector<1x8x384xf32>
    %5 = vector.shape_cast %4 : vector<1x8x384xf32> to vector<8x384xf32>
    %c0_6 = arith.constant 0 : index
    %c0_7 = arith.constant 0 : index
    %c18 = arith.constant 18 : index
    %6 = vector.load %arg1[%c0_6, %c0_7, %c18] : memref<1x8x512xf32, #tpu.memory_space<vmem>>, vector<1x8x384xf32>
    %7 = vector.shape_cast %6 : vector<1x8x384xf32> to vector<8x384xf32>
    %c0_8 = arith.constant 0 : index
    %c0_9 = arith.constant 0 : index
    %c19 = arith.constant 19 : index
    %8 = vector.load %arg1[%c0_8, %c0_9, %c19] : memref<1x8x512xf32, #tpu.memory_space<vmem>>, vector<1x8x384xf32>
    %9 = vector.shape_cast %8 : vector<1x8x384xf32> to vector<8x384xf32>
    %c0_10 = arith.constant 0 : index
    %c0_11 = arith.constant 0 : index
    %c20 = arith.constant 20 : index
    %10 = vector.load %arg1[%c0_10, %c0_11, %c20] : memref<1x8x512xf32, #tpu.memory_space<vmem>>, vector<1x8x384xf32>
    %11 = vector.shape_cast %10 : vector<1x8x384xf32> to vector<8x384xf32>
    %c0_12 = arith.constant 0 : index
    %c0_13 = arith.constant 0 : index
    %c36 = arith.constant 36 : index
    %12 = vector.load %arg1[%c0_12, %c0_13, %c36] : memref<1x8x512xf32, #tpu.memory_space<vmem>>, vector<1x8x384xf32>
    %13 = vector.shape_cast %12 : vector<1x8x384xf32> to vector<8x384xf32>
    %c0_14 = arith.constant 0 : index
    %c0_15 = arith.constant 0 : index
    %c37 = arith.constant 37 : index
    %14 = vector.load %arg1[%c0_14, %c0_15, %c37] : memref<1x8x512xf32, #tpu.memory_space<vmem>>, vector<1x8x384xf32>
    %15 = vector.shape_cast %14 : vector<1x8x384xf32> to vector<8x384xf32>
    %c0_16 = arith.constant 0 : index
    %c0_17 = arith.constant 0 : index
    %c38 = arith.constant 38 : index
    %16 = vector.load %arg1[%c0_16, %c0_17, %c38] : memref<1x8x512xf32, #tpu.memory_space<vmem>>, vector<1x8x384xf32>
    %17 = vector.shape_cast %16 : vector<1x8x384xf32> to vector<8x384xf32>
    %18 = tpu.concatenate %1, %3, %5, %7, %9, %11, %13, %15, %17 in 0 : vector<8x384xf32>, vector<8x384xf32>, vector<8x384xf32>, vector<8x384xf32>, vector<8x384xf32>, vector<8x384xf32>, vector<8x384xf32>, vector<8x384xf32>, vector<8x384xf32> -> vector<72x384xf32>
    %c0_18 = arith.constant 0 : index
    %c0_19 = arith.constant 0 : index
    %19 = vector.load %arg4[%c0_18, %c0_19] : memref<8x72xf32, #tpu.memory_space<vmem>>, vector<8x72xf32>
    %cst = arith.constant dense<0.000000e+00> : vector<8x384xf32>
    %20 = tpu.matmul %19, %18, %cst {dimension_numbers = #tpu.dot_dimension_numbers<[1], [0], [0], [1], [0, 0, 1, 1], [], []>} : vector<8x72xf32>, vector<72x384xf32>, vector<8x384xf32> -> vector<8x384xf32>
    %c0_20 = arith.constant 0 : index
    %c0_21 = arith.constant 0 : index
    %21 = vector.load %arg5[%c0_20, %c0_21] : memref<8x1xf32, #tpu.memory_space<vmem>>, vector<8x1xf32>
    %22 = vector.broadcast %21 : vector<8x1xf32> to vector<8x384xf32>
    %23 = arith.addf %20, %22 : vector<8x384xf32>
    %cst_22 = arith.constant 0.000000e+00 : f32
    %24 = vector.broadcast %cst_22 : f32 to vector<8x384xf32>
    %25 = arith.maximumf %23, %24 : vector<8x384xf32>
    %c0_23 = arith.constant 0 : index
    %c0_24 = arith.constant 0 : index
    %c0_25 = arith.constant 0 : index
    %26 = vector.load %arg2[%c0_23, %c0_24, %c0_25] : memref<1x8x384xf32, #tpu.memory_space<vmem>>, vector<1x8x384xf32>
    %27 = vector.shape_cast %26 : vector<1x8x384xf32> to vector<8x384xf32>
    %28 = arith.addf %25, %27 : vector<8x384xf32>
    %c0_26 = arith.constant 0 : index
    %c0_27 = arith.constant 0 : index
    %29 = vector.load %arg3[%c0_26, %c0_27] : memref<1x384xf32, #tpu.memory_space<vmem>>, vector<1x384xf32>
    %30 = vector.broadcast %29 : vector<1x384xf32> to vector<8x384xf32>
    %31 = arith.mulf %28, %30 : vector<8x384xf32>
    %cst_28 = arith.constant 0.000000e+00 : f32
    %32 = vector.broadcast %cst_28 : f32 to vector<8x512xf32>
    %c0_29 = arith.constant 0 : index
    %c0_30 = arith.constant 0 : index
    %33 = vector.load %arg9[%c0_29, %c0_30] : memref<8x512xf32, #tpu.memory_space<vmem>>, vector<8x512xf32>
    tpu.vector_store %arg9[%c0_29, %c0_30], %32 {strides = array<i32>} : memref<8x512xf32, #tpu.memory_space<vmem>>, vector<8x512xf32>,
    %c0_31 = arith.constant 0 : index
    %c19_32 = arith.constant 19 : index
    %34 = vector.load %arg9[%c0_31, %c19_32] : memref<8x512xf32, #tpu.memory_space<vmem>>, vector<8x384xf32>
    tpu.vector_store %arg9[%c0_31, %c19_32], %31 {strides = array<i32>} : memref<8x512xf32, #tpu.memory_space<vmem>>, vector<8x384xf32>,
    %c0_33 = arith.constant 0 : index
    %c0_34 = arith.constant 0 : index
    %35 = vector.load %arg9[%c0_33, %c0_34] : memref<8x512xf32, #tpu.memory_space<vmem>>, vector<8x384xf32>
    %c0_35 = arith.constant 0 : index
    %c1_36 = arith.constant 1 : index
    %36 = vector.load %arg9[%c0_35, %c1_36] : memref<8x512xf32, #tpu.memory_space<vmem>>, vector<8x384xf32>
    %c0_37 = arith.constant 0 : index
    %c2_38 = arith.constant 2 : index
    %37 = vector.load %arg9[%c0_37, %c2_38] : memref<8x512xf32, #tpu.memory_space<vmem>>, vector<8x384xf32>
    %c0_39 = arith.constant 0 : index
    %c18_40 = arith.constant 18 : index
    %38 = vector.load %arg9[%c0_39, %c18_40] : memref<8x512xf32, #tpu.memory_space<vmem>>, vector<8x384xf32>
    %c0_41 = arith.constant 0 : index
    %c19_42 = arith.constant 19 : index
    %39 = vector.load %arg9[%c0_41, %c19_42] : memref<8x512xf32, #tpu.memory_space<vmem>>, vector<8x384xf32>
    %c0_43 = arith.constant 0 : index
    %c20_44 = arith.constant 20 : index
    %40 = vector.load %arg9[%c0_43, %c20_44] : memref<8x512xf32, #tpu.memory_space<vmem>>, vector<8x384xf32>
    %c0_45 = arith.constant 0 : index
    %c36_46 = arith.constant 36 : index
    %41 = vector.load %arg9[%c0_45, %c36_46] : memref<8x512xf32, #tpu.memory_space<vmem>>, vector<8x384xf32>
    %c0_47 = arith.constant 0 : index
    %c37_48 = arith.constant 37 : index
    %42 = vector.load %arg9[%c0_47, %c37_48] : memref<8x512xf32, #tpu.memory_space<vmem>>, vector<8x384xf32>
    %c0_49 = arith.constant 0 : index
    %c38_50 = arith.constant 38 : index
    %43 = vector.load %arg9[%c0_49, %c38_50] : memref<8x512xf32, #tpu.memory_space<vmem>>, vector<8x384xf32>
    %44 = tpu.concatenate %35, %36, %37, %38, %39, %40, %41, %42, %43 in 0 : vector<8x384xf32>, vector<8x384xf32>, vector<8x384xf32>, vector<8x384xf32>, vector<8x384xf32>, vector<8x384xf32>, vector<8x384xf32>, vector<8x384xf32>, vector<8x384xf32> -> vector<72x384xf32>
    %c0_51 = arith.constant 0 : index
    %c0_52 = arith.constant 0 : index
    %45 = vector.load %arg6[%c0_51, %c0_52] : memref<8x72xf32, #tpu.memory_space<vmem>>, vector<8x72xf32>
    %cst_53 = arith.constant dense<0.000000e+00> : vector<8x384xf32>
    %46 = tpu.matmul %45, %44, %cst_53 {dimension_numbers = #tpu.dot_dimension_numbers<[1], [0], [0], [1], [0, 0, 1, 1], [], []>} : vector<8x72xf32>, vector<72x384xf32>, vector<8x384xf32> -> vector<8x384xf32>
    %c0_54 = arith.constant 0 : index
    %c0_55 = arith.constant 0 : index
    %47 = vector.load %arg7[%c0_54, %c0_55] : memref<8x1xf32, #tpu.memory_space<vmem>>, vector<8x1xf32>
    %48 = vector.broadcast %47 : vector<8x1xf32> to vector<8x384xf32>
    %49 = arith.addf %46, %48 : vector<8x384xf32>
    %cst_56 = arith.constant 0.000000e+00 : f32
    %50 = vector.broadcast %cst_56 : f32 to vector<8x384xf32>
    %51 = arith.maximumf %49, %50 : vector<8x384xf32>
    %c0_57 = arith.constant 0 : index
    %c0_58 = arith.constant 0 : index
    %c0_59 = arith.constant 0 : index
    %52 = vector.load %arg8[%c0_57, %c0_58, %c0_59] : memref<1x8x384xf32, #tpu.memory_space<vmem>>, vector<1x8x384xf32>
    %53 = vector.shape_cast %52 : vector<1x8x384xf32> to vector<8x384xf32>
    %54 = vector.shape_cast %51 : vector<8x384xf32> to vector<1x8x384xf32>
    tpu.vector_store %arg8[%c0_57, %c0_58, %c0_59], %54 {strides = array<i32>} : memref<1x8x384xf32, #tpu.memory_space<vmem>>, vector<1x8x384xf32>,
    return
  }
  func.func @transform_0(%arg0: i32) -> (i32, i32, i32) {
    %c0_i32 = arith.constant 0 : i32
    %c0_i32_0 = arith.constant 0 : i32
    %c0_i32_1 = arith.constant 0 : i32
    return %arg0, %c0_i32, %c0_i32_0 : i32, i32, i32
  }
  func.func @transform_1(%arg0: i32) -> (i32, i32, i32) {
    %c0_i32 = arith.constant 0 : i32
    %c0_i32_0 = arith.constant 0 : i32
    %c0_i32_1 = arith.constant 0 : i32
    return %arg0, %c0_i32, %c0_i32_0 : i32, i32, i32
  }
  func.func @transform_2(%arg0: i32) -> (i32, i32) {
    %c0_i32 = arith.constant 0 : i32
    %c0_i32_0 = arith.constant 0 : i32
    %c0_i32_1 = arith.constant 0 : i32
    return %c0_i32, %c0_i32_0 : i32, i32
  }
  func.func @transform_3(%arg0: i32) -> (i32, i32) {
    %c0_i32 = arith.constant 0 : i32
    %c0_i32_0 = arith.constant 0 : i32
    %c0_i32_1 = arith.constant 0 : i32
    return %c0_i32, %c0_i32_0 : i32, i32
  }
  func.func @transform_4(%arg0: i32) -> (i32, i32) {
    %c0_i32 = arith.constant 0 : i32
    %c0_i32_0 = arith.constant 0 : i32
    %c0_i32_1 = arith.constant 0 : i32
    return %c0_i32, %c0_i32_0 : i32, i32
  }
  func.func @transform_5(%arg0: i32) -> (i32, i32) {
    %c0_i32 = arith.constant 0 : i32
    %c0_i32_0 = arith.constant 0 : i32
    %c0_i32_1 = arith.constant 0 : i32
    return %c0_i32, %c0_i32_0 : i32, i32
  }
  func.func @transform_6(%arg0: i32) -> (i32, i32) {
    %c0_i32 = arith.constant 0 : i32
    %c0_i32_0 = arith.constant 0 : i32
    %c0_i32_1 = arith.constant 0 : i32
    return %c0_i32, %c0_i32_0 : i32, i32
  }
  func.func @transform_7(%arg0: i32) -> (i32, i32, i32) {
    %c0_i32 = arith.constant 0 : i32
    %c0_i32_0 = arith.constant 0 : i32
    %c0_i32_1 = arith.constant 0 : i32
    return %arg0, %c0_i32, %c0_i32_0 : i32, i32, i32
  }
}

</mosaic_0001>

<llo_original>
// kernel: tpu_custom_call.1
$region0: #{tpu_custom_call.1}
  #allocation0 [shape = 'u32[]', space=smem, size = 0x4, offset = 0x4, fixed_abs, tag = 'smem constant byte address 0x4 - core index']
  #allocation1 [shape = 'u32[144,128]{1,0:T(1,128)}', space=vmem, size = 0x12000, scoped, tag = 'internal scratch']
  #allocation2 [shape = 'f32[8,512]{1,0:T(8,128)}', space=vmem, size = 0x4000, scoped, tag = 'scratch operand']
  %s0 = inlined_call_operand.hbm [shape: f32[2,8,512], index: 0, kind: input, shape index: {}]
  %s1 = inlined_call_operand.hbm [shape: f32[2,8,384], index: 1, kind: input, shape index: {}]
  %s2 = inlined_call_operand.vmem [shape: f32[1,384], index: 2, kind: input, shape index: {}]
  %s3 = inlined_call_operand.vmem [shape: f32[8,72], index: 3, kind: input, shape index: {}]
  %s4 = inlined_call_operand.vmem [shape: f32[8,1], index: 4, kind: input, shape index: {}]
  %s5 = inlined_call_operand.vmem [shape: f32[8,72], index: 5, kind: input, shape index: {}]
  %s6 = inlined_call_operand.vmem [shape: f32[8,1], index: 6, kind: input, shape index: {}]
  %s7 = inlined_call_operand.hbm [shape: f32[2,8,384], index: 7, kind: output, shape index: {}]
  %s8 = sld [smem:[#allocation0]]
  $region69: #{tpu_custom_call.1} parent=0
    _
  %s10 = ssub.s32 1, %s8
  %s11 = scalar_select 0, %s10, %s8
  $region1: #{tpu_custom_call.1} parent=0
    #allocation3 [shape = 'u8[32768]{0}', space=vmem, size = 0x8000, scoped, tag = 'input window, operand 0']
    #allocation4 [shape = 's32[2]{0}', space=sflag, size = 0x8, scoped, tag = 'scoped memory for tpu_custom_call.1']
    #allocation5 [shape = 's32[2]{0}', space=sflag, size = 0x8, scoped, tag = 'scoped memory for tpu_custom_call.1']
    #allocation6 [shape = 'u8[24576]{0}', space=vmem, size = 0x6000, scoped, tag = 'input window, operand 1']
    #allocation7 [shape = 's32[2]{0}', space=sflag, size = 0x8, scoped, tag = 'scoped memory for tpu_custom_call.1']
    #allocation8 [shape = 'u8[24576]{0}', space=vmem, size = 0x6000, scoped, tag = 'output window, operand 0']
    %12 = vsyncpa [#allocation4], 0
    %s13 = scalar_lea.sflag [#allocation4], 1
    %14 = vsyncpa %s13, 0
    %15 = vsyncpa [#allocation7], 0
    %s16 = scalar_lea.sflag [#allocation7], 1
    %17 = vsyncpa %s16, 0
    %18 = vsyncpa [#allocation5], 0
    %s19 = scalar_lea.sflag [#allocation5], 1
    %20 = vsyncpa %s19, 0
    loop: start=0, step=1, limit=4
    $region2: #{tpu_custom_call.1} parent=1 // loop_pre_header
      _
    $region3: #{tpu_custom_call.1} parent=1 // loop_header
      %s22 = sphi 0, %s26
      %p23 = scmp.ge.s32.totalorder %s22, 4
      %s32 = sphi 0, %s34
      %s35 = sphi 0, %s32
      %s36 = sphi 0, %s35
      %s52 = sphi 0, %s36
      %s58 = sphi 0, %s60
      %s61 = sphi 0, %s58
      %s62 = sphi 0, %s61
      %s78 = sphi 0, %s62
      %s82 = sphi 0, %s82
      %s84 = sphi 0, %s82
      %s85 = sphi 0, %s84
      %s99 = sphi 0, %s85
      %s103 = sphi 0, %s103
      %s105 = sphi 0, %s103
      %s106 = sphi 0, %s105
      %s120 = sphi 0, %s106
      %s124 = sphi 0, %s124
      %s126 = sphi 0, %s124
      %s127 = sphi 0, %s126
      %s141 = sphi 0, %s127
      %s145 = sphi 0, %s145
      %s147 = sphi 0, %s145
      %s148 = sphi 0, %s147
      %s162 = sphi 0, %s148
      %s166 = sphi 0, %s166
      %s168 = sphi 0, %s166
      %s169 = sphi 0, %s168
      %s183 = sphi 0, %s169
      %s189 = sphi 0, %s191
      %s192 = sphi 0, %s189
      %s193 = sphi 0, %s192
      %s209 = sphi 0, %s193
    $region4: #{tpu_custom_call.1} parent=1 // loop_header_branch
      %25 = sbr.rel (%p23) target = $region8
    $region5: #{tpu_custom_call.1} parent=1 // loop_body
      %s27 = ssub.s32 %s22, 1
      %s28 = ssub.s32 %s22, 2
      %s29 = sadd.s32 %s22, 1
      %s30 = ssub.s32 %s22, %s29
      %p31 = scmp.eq.s32.totalorder %s30, 0
      %s33 = sadd.s32 %s32, 1
      %s34 = scalar_select %p31, %s32, %s33
      %p37 = pneg %p31
      %p38 = scmp.eq.s32.totalorder %s22, 1
      %p39 = por %p37, %p38
      %p40 = scmp.ne.s32.totalorder %s32, %s35
      %p41 = scmp.eq.s32.totalorder %s22, 0
      %p42 = por %p40, %p41
      %p43 = scmp.ne.s32.totalorder %s32, %s35
      %p44 = scmp.eq.s32.totalorder %s27, 1
      %p45 = por %p43, %p44
      %p46 = scmp.ne.s32.totalorder %s35, %s36
      %p47 = scmp.eq.s32.totalorder %s27, 0
      %p48 = por %p46, %p47
      %p49 = scmp.ne.s32.totalorder %s35, %s36
      %p50 = scmp.eq.s32.totalorder %s28, 1
      %p51 = por %p49, %p50
      %p53 = scmp.ne.s32.totalorder %s36, %s52
      %p54 = scmp.eq.s32.totalorder %s28, 0
      %p55 = por %p53, %p54
      %s56 = ssub.s32 %s22, %s29
      %p57 = scmp.eq.s32.totalorder %s56, 0
      %s59 = sadd.s32 %s58, 1
      %s60 = scalar_select %p57, %s58, %s59
      %p63 = pneg %p57
      %p64 = scmp.eq.s32.totalorder %s22, 1
      %p65 = por %p63, %p64
      %p66 = scmp.ne.s32.totalorder %s58, %s61
      %p67 = scmp.eq.s32.totalorder %s22, 0
      %p68 = por %p66, %p67
      %p69 = scmp.ne.s32.totalorder %s58, %s61
      %p70 = scmp.eq.s32.totalorder %s27, 1
      %p71 = por %p69, %p70
      %p72 = scmp.ne.s32.totalorder %s61, %s62
      %p73 = scmp.eq.s32.totalorder %s27, 0
      %p74 = por %p72, %p73
      %p75 = scmp.ne.s32.totalorder %s61, %s62
      %p76 = scmp.eq.s32.totalorder %s28, 1
      %p77 = por %p75, %p76
      %p79 = scmp.ne.s32.totalorder %s62, %s78
      %p80 = scmp.eq.s32.totalorder %s28, 0
      %p81 = por %p79, %p80
      %s83 = sadd.s32 %s82, 1
      %p86 = scmp.eq.s32.totalorder %s22, 1
      %p87 = scmp.ne.s32.totalorder %s82, %s84
      %p88 = scmp.eq.s32.totalorder %s22, 0
      %p89 = por %p87, %p88
      %p90 = scmp.ne.s32.totalorder %s82, %s84
      %p91 = scmp.eq.s32.totalorder %s27, 1
      %p92 = por %p90, %p91
      %p93 = scmp.ne.s32.totalorder %s84, %s85
      %p94 = scmp.eq.s32.totalorder %s27, 0
      %p95 = por %p93, %p94
      %p96 = scmp.ne.s32.totalorder %s84, %s85
      %p97 = scmp.eq.s32.totalorder %s28, 1
      %p98 = por %p96, %p97
      %p100 = scmp.ne.s32.totalorder %s85, %s99
      %p101 = scmp.eq.s32.totalorder %s28, 0
      %p102 = por %p100, %p101
      %s104 = sadd.s32 %s103, 1
      %p107 = scmp.eq.s32.totalorder %s22, 1
      %p108 = scmp.ne.s32.totalorder %s103, %s105
      %p109 = scmp.eq.s32.totalorder %s22, 0
      %p110 = por %p108, %p109
      %p111 = scmp.ne.s32.totalorder %s103, %s105
      %p112 = scmp.eq.s32.totalorder %s27, 1
      %p113 = por %p111, %p112
      %p114 = scmp.ne.s32.totalorder %s105, %s106
      %p115 = scmp.eq.s32.totalorder %s27, 0
      %p116 = por %p114, %p115
      %p117 = scmp.ne.s32.totalorder %s105, %s106
      %p118 = scmp.eq.s32.totalorder %s28, 1
      %p119 = por %p117, %p118
      %p121 = scmp.ne.s32.totalorder %s106, %s120
      %p122 = scmp.eq.s32.totalorder %s28, 0
      %p123 = por %p121, %p122
      %s125 = sadd.s32 %s124, 1
      %p128 = scmp.eq.s32.totalorder %s22, 1
      %p129 = scmp.ne.s32.totalorder %s124, %s126
      %p130 = scmp.eq.s32.totalorder %s22, 0
      %p131 = por %p129, %p130
      %p132 = scmp.ne.s32.totalorder %s124, %s126
      %p133 = scmp.eq.s32.totalorder %s27, 1
      %p134 = por %p132, %p133
      %p135 = scmp.ne.s32.totalorder %s126, %s127
      %p136 = scmp.eq.s32.totalorder %s27, 0
      %p137 = por %p135, %p136
      %p138 = scmp.ne.s32.totalorder %s126, %s127
      %p139 = scmp.eq.s32.totalorder %s28, 1
      %p140 = por %p138, %p139
      %p142 = scmp.ne.s32.totalorder %s127, %s141
      %p143 = scmp.eq.s32.totalorder %s28, 0
      %p144 = por %p142, %p143
      %s146 = sadd.s32 %s145, 1
      %p149 = scmp.eq.s32.totalorder %s22, 1
      %p150 = scmp.ne.s32.totalorder %s145, %s147
      %p151 = scmp.eq.s32.totalorder %s22, 0
      %p152 = por %p150, %p151
      %p153 = scmp.ne.s32.totalorder %s145, %s147
      %p154 = scmp.eq.s32.totalorder %s27, 1
      %p155 = por %p153, %p154
      %p156 = scmp.ne.s32.totalorder %s147, %s148
      %p157 = scmp.eq.s32.totalorder %s27, 0
      %p158 = por %p156, %p157
      %p159 = scmp.ne.s32.totalorder %s147, %s148
      %p160 = scmp.eq.s32.totalorder %s28, 1
      %p161 = por %p159, %p160
      %p163 = scmp.ne.s32.totalorder %s148, %s162
      %p164 = scmp.eq.s32.totalorder %s28, 0
      %p165 = por %p163, %p164
      %s167 = sadd.s32 %s166, 1
      %p170 = scmp.eq.s32.totalorder %s22, 1
      %p171 = scmp.ne.s32.totalorder %s166, %s168
      %p172 = scmp.eq.s32.totalorder %s22, 0
      %p173 = por %p171, %p172
      %p174 = scmp.ne.s32.totalorder %s166, %s168
      %p175 = scmp.eq.s32.totalorder %s27, 1
      %p176 = por %p174, %p175
      %p177 = scmp.ne.s32.totalorder %s168, %s169
      %p178 = scmp.eq.s32.totalorder %s27, 0
      %p179 = por %p177, %p178
      %p180 = scmp.ne.s32.totalorder %s168, %s169
      %p181 = scmp.eq.s32.totalorder %s28, 1
      %p182 = por %p180, %p181
      %p184 = scmp.ne.s32.totalorder %s169, %s183
      %p185 = scmp.eq.s32.totalorder %s28, 0
      %p186 = por %p184, %p185
      %s187 = ssub.s32 %s22, %s29
      %p188 = scmp.eq.s32.totalorder %s187, 0
      %s190 = sadd.s32 %s189, 1
      %s191 = scalar_select %p188, %s189, %s190
      %p194 = pneg %p188
      %p195 = scmp.eq.s32.totalorder %s22, 1
      %p196 = por %p194, %p195
      %p197 = scmp.ne.s32.totalorder %s189, %s192
      %p198 = scmp.eq.s32.totalorder %s22, 0
      %p199 = por %p197, %p198
      %p200 = scmp.ne.s32.totalorder %s189, %s192
      %p201 = scmp.eq.s32.totalorder %s27, 1
      %p202 = por %p200, %p201
      %p203 = scmp.ne.s32.totalorder %s192, %s193
      %p204 = scmp.eq.s32.totalorder %s27, 0
      %p205 = por %p203, %p204
      %p206 = scmp.ne.s32.totalorder %s192, %s193
      %p207 = scmp.eq.s32.totalorder %s28, 1
      %p208 = por %p206, %p207
      %p210 = scmp.ne.s32.totalorder %s193, %s209
      %p211 = scmp.eq.s32.totalorder %s28, 0
      %p212 = por %p210, %p211
      %p213 = scmp.le.s32.totalorder 1, %s22
      %p214 = scmp.lt.s32.totalorder %s22, 3
      %p215 = pnand %p213, %p214
      %p216 = pneg %p215
      // Predicated region
      $region9: #{tpu_custom_call.1} parent=5 // pred_check
        _
      $region10: #{tpu_custom_call.1} parent=5 // pred_check_branch
        %218 = sbr.rel (%p215) target = $region12
      $region11: #{tpu_custom_call.1} parent=5 // pred_region
        %s219 = ssub.s32 %s22, 1
        // Predicated region
        $region13: #{tpu_custom_call.1} parent=11 // pred_check
          %p220 = pneg %p95
        $region14: #{tpu_custom_call.1} parent=11 // pred_check_branch
          %222 = sbr.rel (%p220) target = $region16
        $region15: #{tpu_custom_call.1} parent=11 // pred_region
          _
        $region16: #{tpu_custom_call.1} parent=11 // pred_fallthru
          _
        // Predicated region
        $region17: #{tpu_custom_call.1} parent=11 // pred_check
          %p223 = pneg %p116
        $region18: #{tpu_custom_call.1} parent=11 // pred_check_branch
          %225 = sbr.rel (%p223) target = $region20
        $region19: #{tpu_custom_call.1} parent=11 // pred_region
          _
        $region20: #{tpu_custom_call.1} parent=11 // pred_fallthru
          _
        // Predicated region
        $region21: #{tpu_custom_call.1} parent=11 // pred_check
          %p226 = pneg %p137
        $region22: #{tpu_custom_call.1} parent=11 // pred_check_branch
          %228 = sbr.rel (%p226) target = $region24
        $region23: #{tpu_custom_call.1} parent=11 // pred_region
          _
        $region24: #{tpu_custom_call.1} parent=11 // pred_fallthru
          _
        // Predicated region
        $region25: #{tpu_custom_call.1} parent=11 // pred_check
          %p229 = pneg %p158
        $region26: #{tpu_custom_call.1} parent=11 // pred_check_branch
          %231 = sbr.rel (%p229) target = $region28
        $region27: #{tpu_custom_call.1} parent=11 // pred_region
          _
        $region28: #{tpu_custom_call.1} parent=11 // pred_fallthru
          _
        // Predicated region
        $region29: #{tpu_custom_call.1} parent=11 // pred_check
          %p232 = pneg %p179
        $region30: #{tpu_custom_call.1} parent=11 // pred_check_branch
          %234 = sbr.rel (%p232) target = $region32
        $region31: #{tpu_custom_call.1} parent=11 // pred_region
          _
        $region32: #{tpu_custom_call.1} parent=11 // pred_fallthru
          _
      $region12: #{tpu_custom_call.1} parent=5 // pred_fallthru
        _
      %p235 = scmp.lt.s32.totalorder %s22, 2
      // Predicated region
      $region33: #{tpu_custom_call.1} parent=5 // pred_check
        %p236 = pneg %p235
      $region34: #{tpu_custom_call.1} parent=5 // pred_check_branch
        %238 = sbr.rel (%p236) target = $region36
      $region35: #{tpu_custom_call.1} parent=5 // pred_region
        // Predicated region
        $region37: #{tpu_custom_call.1} parent=35 // pred_check
          %p239 = pneg %p42
        $region38: #{tpu_custom_call.1} parent=35 // pred_check_branch
          %241 = sbr.rel (%p239) target = $region40
        $region39: #{tpu_custom_call.1} parent=35 // pred_region
          %s242 = sand.u32 %s32, 1
          %s243 = scalar_lea.sflag [#allocation4], %s242
          %s244 = sand.u32 %s32, 1
          %s245 = smul.addr %s244, 32
          %s246 = scalar_lea.vmem [#allocation3], %s245
          %s248 = ssub.s32 512, 512
          %249 = vsyncadd %s243, %s248
          %s250 = smul.addr %s22, 4
          %s251 = smul.addr %s250, 128
          %s252 = scalar_lea.hbm %s0, %s251
          %s254 = sshll.u32 %s246, 4
          %s255 = int_to_ptr.vmem [resolvable:$true] %s254
          %257 = dma.hbm_to_vmem [thread:$0]  %s252, 512, %s255, %s243
        $region40: #{tpu_custom_call.1} parent=35 // pred_fallthru
          _
        // Predicated region
        $region41: #{tpu_custom_call.1} parent=35 // pred_check
          %p258 = pneg %p68
        $region42: #{tpu_custom_call.1} parent=35 // pred_check_branch
          %260 = sbr.rel (%p258) target = $region44
        $region43: #{tpu_custom_call.1} parent=35 // pred_region
          %s261 = sand.u32 %s58, 1
          %s262 = scalar_lea.sflag [#allocation7], %s261
          %s263 = sand.u32 %s58, 1
          %s264 = smul.addr %s263, 24
          %s265 = scalar_lea.vmem [#allocation6], %s264
          %s267 = ssub.s32 384, 384
          %268 = vsyncadd %s262, %s267
          %s269 = smul.addr %s22, 3
          %s270 = smul.addr %s269, 128
          %s271 = scalar_lea.hbm %s1, %s270
          %s273 = sshll.u32 %s265, 4
          %s274 = int_to_ptr.vmem [resolvable:$true] %s273
          %276 = dma.hbm_to_vmem [thread:$0]  %s271, 384, %s274, %s262
        $region44: #{tpu_custom_call.1} parent=35 // pred_fallthru
          _
      $region36: #{tpu_custom_call.1} parent=5 // pred_fallthru
        _
      %p277 = scmp.le.s32.totalorder 1, %s22
      %p278 = scmp.lt.s32.totalorder %s22, 3
      %p279 = pnand %p277, %p278
      %p280 = pneg %p279
      // Predicated region
      $region45: #{tpu_custom_call.1} parent=5 // pred_check
        _
      $region46: #{tpu_custom_call.1} parent=5 // pred_check_branch
        %282 = sbr.rel (%p279) target = $region48
      $region47: #{tpu_custom_call.1} parent=5 // pred_region
        %s283 = ssub.s32 %s22, 1
        %s284 = sand.u32 %s35, 1
        %s285 = scalar_lea.sflag [#allocation4], %s284
        %s286 = sand.u32 %s35, 1
        %s287 = smul.addr %s286, 32
        %s288 = scalar_lea.vmem [#allocation3], %s287
        // Predicated region
        $region49: #{tpu_custom_call.1} parent=47 // pred_check
          %p289 = pneg %p48
        $region50: #{tpu_custom_call.1} parent=47 // pred_check_branch
          %291 = sbr.rel (%p289) target = $region52
        $region51: #{tpu_custom_call.1} parent=47 // pred_region
          %292 = dma.done %s285, 512
        $region52: #{tpu_custom_call.1} parent=47 // pred_fallthru
          _
        %s293 = sand.u32 %s61, 1
        %s294 = scalar_lea.sflag [#allocation7], %s293
        %s295 = sand.u32 %s61, 1
        %s296 = smul.addr %s295, 24
        %s297 = scalar_lea.vmem [#allocation6], %s296
        // Predicated region
        $region53: #{tpu_custom_call.1} parent=47 // pred_check
          %p298 = pneg %p74
        $region54: #{tpu_custom_call.1} parent=47 // pred_check_branch
          %300 = sbr.rel (%p298) target = $region56
        $region55: #{tpu_custom_call.1} parent=47 // pred_region
          %301 = dma.done %s294, 384
        $region56: #{tpu_custom_call.1} parent=47 // pred_fallthru
          _
        %s302 = sand.u32 %s35, 1
        %s303 = scalar_lea.sflag [#allocation4], %s302
        %s304 = sand.u32 %s35, 1
        %s305 = smul.addr %s304, 32
        %s306 = scalar_lea.vmem [#allocation3], %s305
        %p307 = pneg %p48
        %p308 = pneg %p45
        %s309 = sand.u32 %s61, 1
        %s310 = scalar_lea.sflag [#allocation7], %s309
        %s311 = sand.u32 %s61, 1
        %s312 = smul.addr %s311, 24
        %s313 = scalar_lea.vmem [#allocation6], %s312
        %p314 = pneg %p74
        %p315 = pneg %p71
        %p316 = pneg %p95
        %p317 = pneg %p92
        %p318 = pneg %p116
        %p319 = pneg %p113
        %p320 = pneg %p137
        %p321 = pneg %p134
        %p322 = pneg %p158
        %p323 = pneg %p155
        %p324 = pneg %p179
        %p325 = pneg %p176
        %p326 = pneg %p205
        %p327 = pneg %p202
        %s328 = sand.u32 %s192, 1
        %s329 = scalar_lea.sflag [#allocation5], %s328
        %s330 = sand.u32 %s192, 1
        %s331 = smul.addr %s330, 24
        %s332 = scalar_lea.vmem [#allocation8], %s331
        %v333 = vld [vmem:[%s288] sm:$0xff]
        %v334 = vld [vmem:[%s288 + $0x8] sm:$0xff]
        %v335 = vld [vmem:[%s288 + $0x10] sm:$0xff]
        %v336 = vld [vmem:[%s288] sm:$0xff]
        %v337 = vld [vmem:[%s288 + $0x8] sm:$0xff]
        %v338 = vld [vmem:[%s288 + $0x10] sm:$0xff]
        %v339 = vld [vmem:[%s288 + $0x18] sm:$0xff]
        %344 = vrot.lane.b32.xlu0 %v336, 127
        %v345 = vpop.permute.xlu0 %344
        %346 = vrot.lane.b32.xlu0 %v337, 127
        %v347 = vpop.permute.xlu0 %346
        %348 = vrot.lane.b32.xlu0 %v338, 127
        %v349 = vpop.permute.xlu0 %348
        %350 = vrot.lane.b32.xlu0 %v339, 127
        %v351 = vpop.permute.xlu0 %350
        %vm352 = vcmask 1039360
        %v353 = vsel %vm352, %v345, %v347
        %v354 = vsel %vm352, %v347, %v349
        %v355 = vsel %vm352, %v349, %v351
        %359 = vrot.lane.b32.xlu0 %v336, 126
        %v360 = vpop.permute.xlu0 %359
        %361 = vrot.lane.b32.xlu0 %v337, 126
        %v362 = vpop.permute.xlu0 %361
        %363 = vrot.lane.b32.xlu0 %v338, 126
        %v364 = vpop.permute.xlu0 %363
        %365 = vrot.lane.b32.xlu0 %v339, 126
        %v366 = vpop.permute.xlu0 %365
        %vm367 = vcmask 1031168
        %v368 = vsel %vm367, %v360, %v362
        %v369 = vsel %vm367, %v362, %v364
        %v370 = vsel %vm367, %v364, %v366
        %374 = vrot.lane.b32.xlu0 %v336, 110
        %v375 = vpop.permute.xlu0 %374
        %376 = vrot.lane.b32.xlu0 %v337, 110
        %v377 = vpop.permute.xlu0 %376
        %378 = vrot.lane.b32.xlu0 %v338, 110
        %v379 = vpop.permute.xlu0 %378
        %380 = vrot.lane.b32.xlu0 %v339, 110
        %v381 = vpop.permute.xlu0 %380
        %vm382 = vcmask 900096
        %v383 = vsel %vm382, %v375, %v377
        %v384 = vsel %vm382, %v377, %v379
        %v385 = vsel %vm382, %v379, %v381
        %389 = vrot.lane.b32.xlu0 %v336, 109
        %v390 = vpop.permute.xlu0 %389
        %391 = vrot.lane.b32.xlu0 %v337, 109
        %v392 = vpop.permute.xlu0 %391
        %393 = vrot.lane.b32.xlu0 %v338, 109
        %v394 = vpop.permute.xlu0 %393
        %395 = vrot.lane.b32.xlu0 %v339, 109
        %v396 = vpop.permute.xlu0 %395
        %vm397 = vcmask 891904
        %v398 = vsel %vm397, %v390, %v392
        %v399 = vsel %vm397, %v392, %v394
        %v400 = vsel %vm397, %v394, %v396
        %404 = vrot.lane.b32.xlu0 %v336, 108
        %v405 = vpop.permute.xlu0 %404
        %406 = vrot.lane.b32.xlu0 %v337, 108
        %v407 = vpop.permute.xlu0 %406
        %408 = vrot.lane.b32.xlu0 %v338, 108
        %v409 = vpop.permute.xlu0 %408
        %410 = vrot.lane.b32.xlu0 %v339, 108
        %v411 = vpop.permute.xlu0 %410
        %vm412 = vcmask 883712
        %v413 = vsel %vm412, %v405, %v407
        %v414 = vsel %vm412, %v407, %v409
        %v415 = vsel %vm412, %v409, %v411
        %419 = vrot.lane.b32.xlu0 %v336, 92
        %v420 = vpop.permute.xlu0 %419
        %421 = vrot.lane.b32.xlu0 %v337, 92
        %v422 = vpop.permute.xlu0 %421
        %423 = vrot.lane.b32.xlu0 %v338, 92
        %v424 = vpop.permute.xlu0 %423
        %425 = vrot.lane.b32.xlu0 %v339, 92
        %v426 = vpop.permute.xlu0 %425
        %vm427 = vcmask 752640
        %v428 = vsel %vm427, %v420, %v422
        %v429 = vsel %vm427, %v422, %v424
        %v430 = vsel %vm427, %v424, %v426
        %434 = vrot.lane.b32.xlu0 %v336, 91
        %v435 = vpop.permute.xlu0 %434
        %436 = vrot.lane.b32.xlu0 %v337, 91
        %v437 = vpop.permute.xlu0 %436
        %438 = vrot.lane.b32.xlu0 %v338, 91
        %v439 = vpop.permute.xlu0 %438
        %440 = vrot.lane.b32.xlu0 %v339, 91
        %v441 = vpop.permute.xlu0 %440
        %vm442 = vcmask 744448
        %v443 = vsel %vm442, %v435, %v437
        %v444 = vsel %vm442, %v437, %v439
        %v445 = vsel %vm442, %v439, %v441
        %449 = vrot.lane.b32.xlu0 %v336, 90
        %v450 = vpop.permute.xlu0 %449
        %451 = vrot.lane.b32.xlu0 %v337, 90
        %v452 = vpop.permute.xlu0 %451
        %453 = vrot.lane.b32.xlu0 %v338, 90
        %v454 = vpop.permute.xlu0 %453
        %455 = vrot.lane.b32.xlu0 %v339, 90
        %v456 = vpop.permute.xlu0 %455
        %vm457 = vcmask 736256
        %v458 = vsel %vm457, %v450, %v452
        %v459 = vsel %vm457, %v452, %v454
        %v460 = vsel %vm457, %v454, %v456
        %v464 = vld [vmem:[%s3] sm:$0xff]
        %v465 = vld [vmem:[%s4] sm:$0xff]
        %467 = vset.pattern.permute.xlu0 0
        %468 = vperm.xlu0 %467, %v465
        %v469 = vpop.permute.xlu0 %468
        %vm471 = vcmask 588800
        %v473 = vsel %vm471, %v464, 0
        %475 = vmatprep.subr.mxu0 %v334
        %476 = vmatpush1.msra.mxu0 %v333
        %477 = vmatprep.subr.mxu0 %v354
        %478 = vmatpush1.msra.mxu0 %v353
        %479 = vmatprep.subr.mxu0 %v369
        %480 = vmatpush1.msra.mxu0 %v368
        %481 = vmatprep.subr.mxu0 %v384
        %482 = vmatpush1.msra.mxu0 %v383
        %483 = vmatprep.subr.mxu0 %v399
        %484 = vmatpush1.msra.mxu0 %v398
        %485 = vmatprep.subr.mxu0 %v414
        %486 = vmatpush1.msra.mxu0 %v413
        %487 = vmatprep.subr.mxu0 %v429
        %488 = vmatpush1.msra.mxu0 %v428
        %489 = vmatprep.subr.mxu0 %v444
        %490 = vmatpush1.msra.mxu0 %v443
        %491 = vmatprep.subr.mxu0 %v459
        %492 = vmatpush1.msra.mxu0 %v458
        %493 = vmatprep.subr.mxu0 0.0
        %494 = vmatpush1.msra.mxu0 0.0
        %495 = vmatprep.subr.mxu0 0.0
        %496 = vmatpush1.msra.mxu0 0.0
        %497 = vmatprep.subr.mxu0 0.0
        %498 = vmatpush1.msra.mxu0 0.0
        %499 = vmatprep.subr.mxu0 0.0
        %500 = vmatpush1.msra.mxu0 0.0
        %501 = vmatprep.subr.mxu0 0.0
        %502 = vmatpush1.msra.mxu0 0.0
        %503 = vmatprep.subr.mxu0 0.0
        %504 = vmatpush1.msra.mxu0 0.0
        %505 = vmatprep.subr.mxu0 0.0
        %506 = vmatpush1.msra.mxu0 0.0
        %507 = vmatprep.subr.mxu0 0.0
        %508 = vmatpush1.msra.mxu0 0.0
        %509 = vmatprep.subr.mxu0 0.0
        %510 = vmatpush1.msra.mxu0 0.0
        %511 = vmatprep.subr.mxu0 0.0
        %512 = vmatpush1.msra.mxu0 0.0
        %513 = vmatprep.subr.mxu0 0.0
        %514 = vmatpush1.msra.mxu0 0.0
        %515 = vmatprep.subr.mxu0 0.0
        %516 = vmatpush1.msra.mxu0 0.0
        %517 = vmatprep.subr.mxu0 0.0
        %518 = vmatpush1.msra.mxu0 0.0
        %519 = vmatprep.subr.mxu0 0.0
        %520 = vmatpush1.msra.mxu0 0.0
        %521 = vmatprep.subr.mxu0 0.0
        %522 = vmatpush1.msra.mxu0 0.0
        %523 = vmatprep.subr.mxu0 0.0
        %524 = vmatpush1.msra.mxu0 0.0
        %525 = vmatprep.subr.mxu0 0.0
        %526 = vmatpush1.msra.mxu0 0.0
        %527 = vmatprep.subr.mxu0 0.0
        %528 = vmatpush1.msra.mxu0 0.0
        %529 = vmatprep.subr.mxu0 0.0
        %530 = vmatpush1.msra.mxu0 0.0
        %531 = vmatprep.subr.mxu0 0.0
        %532 = vmatpush1.msra.mxu0 0.0
        %533 = vmatprep.subr.mxu0 0.0
        %534 = vmatpush1.msra.mxu0 0.0
        %535 = vmatprep.subr.mxu0 0.0
        %536 = vmatpush1.msra.mxu0 0.0
        %537 = vmatprep.subr.mxu0 0.0
        %538 = vmatpush1.msra.mxu0 0.0
        %539 = vmatprep.mubr.f32.mxu0 0.0
        %540 = vmatmul.mubr.f32.gmra.mrb[0].mxu0 %v473
        %v541 = vpop.f32.mrb[0].mxu0
        %v542 = vadd.f32 %v469, %v541
        %v543 = vpop.f32.mrb[0].mxu0
        %v544 = vadd.f32 %v469, %v543
        %545 = vdwg.mxu0
        %546 = vmatprep.subr.mxu0 0.0
        %547 = vmatpush1.msra.mxu0 %v335
        %548 = vmatprep.subr.mxu0 0.0
        %549 = vmatpush1.msra.mxu0 %v355
        %550 = vmatprep.subr.mxu0 0.0
        %551 = vmatpush1.msra.mxu0 %v370
        %552 = vmatprep.subr.mxu0 0.0
        %553 = vmatpush1.msra.mxu0 %v385
        %554 = vmatprep.subr.mxu0 0.0
        %555 = vmatpush1.msra.mxu0 %v400
        %556 = vmatprep.subr.mxu0 0.0
        %557 = vmatpush1.msra.mxu0 %v415
        %558 = vmatprep.subr.mxu0 0.0
        %559 = vmatpush1.msra.mxu0 %v430
        %560 = vmatprep.subr.mxu0 0.0
        %561 = vmatpush1.msra.mxu0 %v445
        %562 = vmatprep.subr.mxu0 0.0
        %563 = vmatpush1.msra.mxu0 %v460
        %564 = vmatprep.subr.mxu0 0.0
        %565 = vmatpush1.msra.mxu0 0.0
        %566 = vmatprep.subr.mxu0 0.0
        %567 = vmatpush1.msra.mxu0 0.0
        %568 = vmatprep.subr.mxu0 0.0
        %569 = vmatpush1.msra.mxu0 0.0
        %570 = vmatprep.subr.mxu0 0.0
        %571 = vmatpush1.msra.mxu0 0.0
        %572 = vmatprep.subr.mxu0 0.0
        %573 = vmatpush1.msra.mxu0 0.0
        %574 = vmatprep.subr.mxu0 0.0
        %575 = vmatpush1.msra.mxu0 0.0
        %576 = vmatprep.subr.mxu0 0.0
        %577 = vmatpush1.msra.mxu0 0.0
        %578 = vmatprep.subr.mxu0 0.0
        %579 = vmatpush1.msra.mxu0 0.0
        %580 = vmatprep.subr.mxu0 0.0
        %581 = vmatpush1.msra.mxu0 0.0
        %582 = vmatprep.subr.mxu0 0.0
        %583 = vmatpush1.msra.mxu0 0.0
        %584 = vmatprep.subr.mxu0 0.0
        %585 = vmatpush1.msra.mxu0 0.0
        %586 = vmatprep.subr.mxu0 0.0
        %587 = vmatpush1.msra.mxu0 0.0
        %588 = vmatprep.subr.mxu0 0.0
        %589 = vmatpush1.msra.mxu0 0.0
        %590 = vmatprep.subr.mxu0 0.0
        %591 = vmatpush1.msra.mxu0 0.0
        %592 = vmatprep.subr.mxu0 0.0
        %593 = vmatpush1.msra.mxu0 0.0
        %594 = vmatprep.subr.mxu0 0.0
        %595 = vmatpush1.msra.mxu0 0.0
        %596 = vmatprep.subr.mxu0 0.0
        %597 = vmatpush1.msra.mxu0 0.0
        %598 = vmatprep.subr.mxu0 0.0
        %599 = vmatpush1.msra.mxu0 0.0
        %600 = vmatprep.subr.mxu0 0.0
        %601 = vmatpush1.msra.mxu0 0.0
        %602 = vmatprep.subr.mxu0 0.0
        %603 = vmatpush1.msra.mxu0 0.0
        %604 = vmatprep.subr.mxu0 0.0
        %605 = vmatpush1.msra.mxu0 0.0
        %606 = vmatprep.subr.mxu0 0.0
        %607 = vmatpush1.msra.mxu0 0.0
        %608 = vmatprep.subr.mxu0 0.0
        %609 = vmatpush1.msra.mxu0 0.0
        %610 = vmatprep.mubr.f32.mxu0 0.0
        %611 = vmatmul.mubr.f32.gmra.mrb[0].mxu0 %v473
        %v612 = vpop.f32.mrb[0].mxu0
        %v613 = vadd.f32 %v469, %v612
        %v614 = vpop.f32.mrb[0].mxu0
        %615 = vdwg.mxu0
        %v616 = vmax.f32 %v542, 0.0
        %v617 = vmax.f32 %v544, 0.0
        %v618 = vmax.f32 %v613, 0.0
        %v619 = vld [vmem:[%s297] sm:$0xff]
        %v620 = vld [vmem:[%s297 + $0x8] sm:$0xff]
        %v621 = vld [vmem:[%s297 + $0x10] sm:$0xff]
        %v622 = vadd.f32 %v616, %v619
        %v623 = vadd.f32 %v617, %v620
        %v624 = vadd.f32 %v618, %v621
        %v625 = vld [vmem:[%s2] sm:$0x7]
        %v627 = vlaneseq
        %v628 = vshrl.u32 %v627, 7
        %v629 = vsub.s32 0, %v628
        %v630 = vrot.slane %v625, %v629
        %v631 = vlaneseq
        %v632 = vshrl.u32 %v631, 7
        %v633 = vsub.s32 1, %v632
        %v634 = vrot.slane %v625, %v633
        %v635 = vlaneseq
        %v636 = vshrl.u32 %v635, 7
        %v637 = vsub.s32 2, %v636
        %v638 = vrot.slane %v625, %v637
        %v642 = vmul.f32 %v622, %v630
        %v643 = vmul.f32 %v623, %v634
        %v644 = vmul.f32 %v624, %v638
        %645 = vst [vmem:[#allocation2] sm:$0xff] 0.0
        %646 = vst [vmem:[#allocation2 + $0x8] sm:$0xff] 0.0
        %647 = vst [vmem:[#allocation2 + $0x10] sm:$0xff] 0.0
        %648 = vst [vmem:[#allocation2 + $0x18] sm:$0xff] 0.0
        %652 = vrot.lane.b32.xlu0 %v642, 19
        %v653 = vpop.permute.xlu0 %652
        %654 = vrot.lane.b32.xlu0 %v643, 19
        %v655 = vpop.permute.xlu0 %654
        %656 = vrot.lane.b32.xlu0 %v644, 19
        %v657 = vpop.permute.xlu0 %656
        %vm658 = vcmask 154624
        %v659 = vsel %vm658, %v653, %v655
        %v660 = vsel %vm658, %v655, %v657
        %vm665 = vcmask 1047704
        %666 = vst.msk [vmem:[#allocation2] sm:$0xff] %vm665, %v653
        %667 = vst [vmem:[#allocation2 + $0x8] sm:$0xff] %v659
        %668 = vst [vmem:[#allocation2 + $0x10] sm:$0xff] %v660
        %669 = vst.msk [vmem:[#allocation2 + $0x18] sm:$0xff] %vm658, %v657
        %v670 = vld [vmem:[#allocation2] sm:$0xff]
        %v671 = vld [vmem:[#allocation2 + $0x8] sm:$0xff]
        %v672 = vld [vmem:[#allocation2 + $0x10] sm:$0xff]
        %v673 = vld [vmem:[#allocation2] sm:$0xff]
        %v674 = vld [vmem:[#allocation2 + $0x8] sm:$0xff]
        %v675 = vld [vmem:[#allocation2 + $0x10] sm:$0xff]
        %v676 = vld [vmem:[#allocation2 + $0x18] sm:$0xff]
        %681 = vrot.lane.b32.xlu0 %v673, 127
        %v682 = vpop.permute.xlu0 %681
        %683 = vrot.lane.b32.xlu0 %v674, 127
        %v684 = vpop.permute.xlu0 %683
        %685 = vrot.lane.b32.xlu0 %v675, 127
        %v686 = vpop.permute.xlu0 %685
        %687 = vrot.lane.b32.xlu0 %v676, 127
        %v688 = vpop.permute.xlu0 %687
        %v689 = vsel %vm352, %v682, %v684
        %v690 = vsel %vm352, %v684, %v686
        %v691 = vsel %vm352, %v686, %v688
        %695 = vrot.lane.b32.xlu0 %v673, 126
        %v696 = vpop.permute.xlu0 %695
        %697 = vrot.lane.b32.xlu0 %v674, 126
        %v698 = vpop.permute.xlu0 %697
        %699 = vrot.lane.b32.xlu0 %v675, 126
        %v700 = vpop.permute.xlu0 %699
        %701 = vrot.lane.b32.xlu0 %v676, 126
        %v702 = vpop.permute.xlu0 %701
        %v703 = vsel %vm367, %v696, %v698
        %v704 = vsel %vm367, %v698, %v700
        %v705 = vsel %vm367, %v700, %v702
        %709 = vrot.lane.b32.xlu0 %v673, 110
        %v710 = vpop.permute.xlu0 %709
        %711 = vrot.lane.b32.xlu0 %v674, 110
        %v712 = vpop.permute.xlu0 %711
        %713 = vrot.lane.b32.xlu0 %v675, 110
        %v714 = vpop.permute.xlu0 %713
        %715 = vrot.lane.b32.xlu0 %v676, 110
        %v716 = vpop.permute.xlu0 %715
        %v717 = vsel %vm382, %v710, %v712
        %v718 = vsel %vm382, %v712, %v714
        %v719 = vsel %vm382, %v714, %v716
        %723 = vrot.lane.b32.xlu0 %v673, 109
        %v724 = vpop.permute.xlu0 %723
        %725 = vrot.lane.b32.xlu0 %v674, 109
        %v726 = vpop.permute.xlu0 %725
        %727 = vrot.lane.b32.xlu0 %v675, 109
        %v728 = vpop.permute.xlu0 %727
        %729 = vrot.lane.b32.xlu0 %v676, 109
        %v730 = vpop.permute.xlu0 %729
        %v731 = vsel %vm397, %v724, %v726
        %v732 = vsel %vm397, %v726, %v728
        %v733 = vsel %vm397, %v728, %v730
        %737 = vrot.lane.b32.xlu0 %v673, 108
        %v738 = vpop.permute.xlu0 %737
        %739 = vrot.lane.b32.xlu0 %v674, 108
        %v740 = vpop.permute.xlu0 %739
        %741 = vrot.lane.b32.xlu0 %v675, 108
        %v742 = vpop.permute.xlu0 %741
        %743 = vrot.lane.b32.xlu0 %v676, 108
        %v744 = vpop.permute.xlu0 %743
        %v745 = vsel %vm412, %v738, %v740
        %v746 = vsel %vm412, %v740, %v742
        %v747 = vsel %vm412, %v742, %v744
        %751 = vrot.lane.b32.xlu0 %v673, 92
        %v752 = vpop.permute.xlu0 %751
        %753 = vrot.lane.b32.xlu0 %v674, 92
        %v754 = vpop.permute.xlu0 %753
        %755 = vrot.lane.b32.xlu0 %v675, 92
        %v756 = vpop.permute.xlu0 %755
        %757 = vrot.lane.b32.xlu0 %v676, 92
        %v758 = vpop.permute.xlu0 %757
        %v759 = vsel %vm427, %v752, %v754
        %v760 = vsel %vm427, %v754, %v756
        %v761 = vsel %vm427, %v756, %v758
        %765 = vrot.lane.b32.xlu0 %v673, 91
        %v766 = vpop.permute.xlu0 %765
        %767 = vrot.lane.b32.xlu0 %v674, 91
        %v768 = vpop.permute.xlu0 %767
        %769 = vrot.lane.b32.xlu0 %v675, 91
        %v770 = vpop.permute.xlu0 %769
        %771 = vrot.lane.b32.xlu0 %v676, 91
        %v772 = vpop.permute.xlu0 %771
        %v773 = vsel %vm442, %v766, %v768
        %v774 = vsel %vm442, %v768, %v770
        %v775 = vsel %vm442, %v770, %v772
        %779 = vrot.lane.b32.xlu0 %v673, 90
        %v780 = vpop.permute.xlu0 %779
        %781 = vrot.lane.b32.xlu0 %v674, 90
        %v782 = vpop.permute.xlu0 %781
        %783 = vrot.lane.b32.xlu0 %v675, 90
        %v784 = vpop.permute.xlu0 %783
        %785 = vrot.lane.b32.xlu0 %v676, 90
        %v786 = vpop.permute.xlu0 %785
        %v787 = vsel %vm457, %v780, %v782
        %v788 = vsel %vm457, %v782, %v784
        %v789 = vsel %vm457, %v784, %v786
        %v793 = vld [vmem:[%s5] sm:$0xff]
        %v794 = vld [vmem:[%s6] sm:$0xff]
        %796 = vset.pattern.permute.xlu0 0
        %797 = vperm.xlu0 %796, %v794
        %v798 = vpop.permute.xlu0 %797
        %v801 = vsel %vm471, %v793, 0
        %803 = vmatprep.subr.mxu0 %v671
        %804 = vmatpush1.msra.mxu0 %v670
        %805 = vmatprep.subr.mxu0 %v690
        %806 = vmatpush1.msra.mxu0 %v689
        %807 = vmatprep.subr.mxu0 %v704
        %808 = vmatpush1.msra.mxu0 %v703
        %809 = vmatprep.subr.mxu0 %v718
        %810 = vmatpush1.msra.mxu0 %v717
        %811 = vmatprep.subr.mxu0 %v732
        %812 = vmatpush1.msra.mxu0 %v731
        %813 = vmatprep.subr.mxu0 %v746
        %814 = vmatpush1.msra.mxu0 %v745
        %815 = vmatprep.subr.mxu0 %v760
        %816 = vmatpush1.msra.mxu0 %v759
        %817 = vmatprep.subr.mxu0 %v774
        %818 = vmatpush1.msra.mxu0 %v773
        %819 = vmatprep.subr.mxu0 %v788
        %820 = vmatpush1.msra.mxu0 %v787
        %821 = vmatprep.subr.mxu0 0.0
        %822 = vmatpush1.msra.mxu0 0.0
        %823 = vmatprep.subr.mxu0 0.0
        %824 = vmatpush1.msra.mxu0 0.0
        %825 = vmatprep.subr.mxu0 0.0
        %826 = vmatpush1.msra.mxu0 0.0
        %827 = vmatprep.subr.mxu0 0.0
        %828 = vmatpush1.msra.mxu0 0.0
        %829 = vmatprep.subr.mxu0 0.0
        %830 = vmatpush1.msra.mxu0 0.0
        %831 = vmatprep.subr.mxu0 0.0
        %832 = vmatpush1.msra.mxu0 0.0
        %833 = vmatprep.subr.mxu0 0.0
        %834 = vmatpush1.msra.mxu0 0.0
        %835 = vmatprep.subr.mxu0 0.0
        %836 = vmatpush1.msra.mxu0 0.0
        %837 = vmatprep.subr.mxu0 0.0
        %838 = vmatpush1.msra.mxu0 0.0
        %839 = vmatprep.subr.mxu0 0.0
        %840 = vmatpush1.msra.mxu0 0.0
        %841 = vmatprep.subr.mxu0 0.0
        %842 = vmatpush1.msra.mxu0 0.0
        %843 = vmatprep.subr.mxu0 0.0
        %844 = vmatpush1.msra.mxu0 0.0
        %845 = vmatprep.subr.mxu0 0.0
        %846 = vmatpush1.msra.mxu0 0.0
        %847 = vmatprep.subr.mxu0 0.0
        %848 = vmatpush1.msra.mxu0 0.0
        %849 = vmatprep.subr.mxu0 0.0
        %850 = vmatpush1.msra.mxu0 0.0
        %851 = vmatprep.subr.mxu0 0.0
        %852 = vmatpush1.msra.mxu0 0.0
        %853 = vmatprep.subr.mxu0 0.0
        %854 = vmatpush1.msra.mxu0 0.0
        %855 = vmatprep.subr.mxu0 0.0
        %856 = vmatpush1.msra.mxu0 0.0
        %857 = vmatprep.subr.mxu0 0.0
        %858 = vmatpush1.msra.mxu0 0.0
        %859 = vmatprep.subr.mxu0 0.0
        %860 = vmatpush1.msra.mxu0 0.0
        %861 = vmatprep.subr.mxu0 0.0
        %862 = vmatpush1.msra.mxu0 0.0
        %863 = vmatprep.subr.mxu0 0.0
        %864 = vmatpush1.msra.mxu0 0.0
        %865 = vmatprep.subr.mxu0 0.0
        %866 = vmatpush1.msra.mxu0 0.0
        %867 = vmatprep.mubr.f32.mxu0 0.0
        %868 = vmatmul.mubr.f32.gmra.mrb[0].mxu0 %v801
        %v869 = vpop.f32.mrb[0].mxu0
        %v870 = vadd.f32 %v798, %v869
        %v871 = vpop.f32.mrb[0].mxu0
        %v872 = vadd.f32 %v798, %v871
        %873 = vdwg.mxu0
        %874 = vmatprep.subr.mxu0 0.0
        %875 = vmatpush1.msra.mxu0 %v672
        %876 = vmatprep.subr.mxu0 0.0
        %877 = vmatpush1.msra.mxu0 %v691
        %878 = vmatprep.subr.mxu0 0.0
        %879 = vmatpush1.msra.mxu0 %v705
        %880 = vmatprep.subr.mxu0 0.0
        %881 = vmatpush1.msra.mxu0 %v719
        %882 = vmatprep.subr.mxu0 0.0
        %883 = vmatpush1.msra.mxu0 %v733
        %884 = vmatprep.subr.mxu0 0.0
        %885 = vmatpush1.msra.mxu0 %v747
        %886 = vmatprep.subr.mxu0 0.0
        %887 = vmatpush1.msra.mxu0 %v761
        %888 = vmatprep.subr.mxu0 0.0
        %889 = vmatpush1.msra.mxu0 %v775
        %890 = vmatprep.subr.mxu0 0.0
        %891 = vmatpush1.msra.mxu0 %v789
        %892 = vmatprep.subr.mxu0 0.0
        %893 = vmatpush1.msra.mxu0 0.0
        %894 = vmatprep.subr.mxu0 0.0
        %895 = vmatpush1.msra.mxu0 0.0
        %896 = vmatprep.subr.mxu0 0.0
        %897 = vmatpush1.msra.mxu0 0.0
        %898 = vmatprep.subr.mxu0 0.0
        %899 = vmatpush1.msra.mxu0 0.0
        %900 = vmatprep.subr.mxu0 0.0
        %901 = vmatpush1.msra.mxu0 0.0
        %902 = vmatprep.subr.mxu0 0.0
        %903 = vmatpush1.msra.mxu0 0.0
        %904 = vmatprep.subr.mxu0 0.0
        %905 = vmatpush1.msra.mxu0 0.0
        %906 = vmatprep.subr.mxu0 0.0
        %907 = vmatpush1.msra.mxu0 0.0
        %908 = vmatprep.subr.mxu0 0.0
        %909 = vmatpush1.msra.mxu0 0.0
        %910 = vmatprep.subr.mxu0 0.0
        %911 = vmatpush1.msra.mxu0 0.0
        %912 = vmatprep.subr.mxu0 0.0
        %913 = vmatpush1.msra.mxu0 0.0
        %914 = vmatprep.subr.mxu0 0.0
        %915 = vmatpush1.msra.mxu0 0.0
        %916 = vmatprep.subr.mxu0 0.0
        %917 = vmatpush1.msra.mxu0 0.0
        %918 = vmatprep.subr.mxu0 0.0
        %919 = vmatpush1.msra.mxu0 0.0
        %920 = vmatprep.subr.mxu0 0.0
        %921 = vmatpush1.msra.mxu0 0.0
        %922 = vmatprep.subr.mxu0 0.0
        %923 = vmatpush1.msra.mxu0 0.0
        %924 = vmatprep.subr.mxu0 0.0
        %925 = vmatpush1.msra.mxu0 0.0
        %926 = vmatprep.subr.mxu0 0.0
        %927 = vmatpush1.msra.mxu0 0.0
        %928 = vmatprep.subr.mxu0 0.0
        %929 = vmatpush1.msra.mxu0 0.0
        %930 = vmatprep.subr.mxu0 0.0
        %931 = vmatpush1.msra.mxu0 0.0
        %932 = vmatprep.subr.mxu0 0.0
        %933 = vmatpush1.msra.mxu0 0.0
        %934 = vmatprep.subr.mxu0 0.0
        %935 = vmatpush1.msra.mxu0 0.0
        %936 = vmatprep.subr.mxu0 0.0
        %937 = vmatpush1.msra.mxu0 0.0
        %938 = vmatprep.mubr.f32.mxu0 0.0
        %939 = vmatmul.mubr.f32.gmra.mrb[0].mxu0 %v801
        %v940 = vpop.f32.mrb[0].mxu0
        %v941 = vadd.f32 %v798, %v940
        %v942 = vpop.f32.mrb[0].mxu0
        %943 = vdwg.mxu0
        %v944 = vmax.f32 %v870, 0.0
        %v945 = vmax.f32 %v872, 0.0
        %v946 = vmax.f32 %v941, 0.0
        %947 = vst [vmem:[%s332] sm:$0xff] %v944
        %948 = vst [vmem:[%s332 + $0x8] sm:$0xff] %v945
        %949 = vst [vmem:[%s332 + $0x10] sm:$0xff] %v946
        %s950 = sand.u32 %s192, 1
        %s951 = scalar_lea.sflag [#allocation5], %s950
        %s952 = sand.u32 %s192, 1
        %s953 = smul.addr %s952, 24
        %s954 = scalar_lea.vmem [#allocation8], %s953
        // Predicated region
        $region57: #{tpu_custom_call.1} parent=47 // pred_check
          %p955 = pneg %p202
        $region58: #{tpu_custom_call.1} parent=47 // pred_check_branch
          %957 = sbr.rel (%p955) target = $region60
        $region59: #{tpu_custom_call.1} parent=47 // pred_region
          %s959 = ssub.s32 384, 384
          %960 = vsyncadd %s951, %s959
          %s961 = smul.addr %s27, 3
          %s962 = smul.addr %s961, 128
          %s963 = scalar_lea.hbm %s7, %s962
          %s965 = sshll.u32 %s954, 4
          %s966 = int_to_ptr.vmem [resolvable:$true] %s965
          %968 = dma.vmem_to_hbm [thread:$0]  %s966, 384, %s963, %s951
        $region60: #{tpu_custom_call.1} parent=47 // pred_fallthru
          _
      $region48: #{tpu_custom_call.1} parent=5 // pred_fallthru
        _
      %p969 = scmp.le.s32.totalorder 2, %s22
      // Predicated region
      $region61: #{tpu_custom_call.1} parent=5 // pred_check
        %p970 = pneg %p969
      $region62: #{tpu_custom_call.1} parent=5 // pred_check_branch
        %972 = sbr.rel (%p970) target = $region64
      $region63: #{tpu_custom_call.1} parent=5 // pred_region
        %s973 = ssub.s32 %s22, 2
        // Predicated region
        $region65: #{tpu_custom_call.1} parent=63 // pred_check
          %p974 = pneg %p208
        $region66: #{tpu_custom_call.1} parent=63 // pred_check_branch
          %976 = sbr.rel (%p974) target = $region68
        $region67: #{tpu_custom_call.1} parent=63 // pred_region
          %s977 = sand.u32 %s193, 1
          %s978 = scalar_lea.sflag [#allocation5], %s977
          %s979 = sand.u32 %s193, 1
          %s980 = smul.addr %s979, 24
          %s981 = scalar_lea.vmem [#allocation8], %s980
          %982 = dma.done %s978, 384
        $region68: #{tpu_custom_call.1} parent=63 // pred_fallthru
          _
      $region64: #{tpu_custom_call.1} parent=5 // pred_fallthru
        _
    $region6: #{tpu_custom_call.1} parent=1 // loop_footer
      %s26 = sadd.s32 1, %s22
    $region7: #{tpu_custom_call.1} parent=1 // loop_footer_branch
      %21 = sbr.rel target = $region3
    $region8: #{tpu_custom_call.1} parent=1 // loop_exit
      _
    %983 = vsyncpa [#allocation4], 1
    %s984 = scalar_lea.sflag [#allocation4], 1
    %985 = vsyncpa %s984, 1
    %986 = vsyncpa [#allocation7], 1
    %s987 = scalar_lea.sflag [#allocation7], 1
    %988 = vsyncpa %s987, 1
    %989 = vsyncpa [#allocation5], 1
    %s990 = scalar_lea.sflag [#allocation5], 1
    %991 = vsyncpa %s990, 1

</llo_original>
